<compile_context>
chip_gen: v6e
topology: v6e:2x2x1
jax: 0.10.0
libtpu: 0.0.40
codegen_flags: <defaults>
</compile_context>

<pallas_src>
import functools

import jax
import jax.numpy as jnp
from jax.experimental import pallas as pl
from jax.experimental.pallas import tpu as pltpu

_EPS = 1e-12  # F.normalize eps


def _round_up(x, k):
    return (x + k - 1) // k * k


def _triplet_xbm_kernel(col_ref, bank_ref, tcol_ref, trow_ref, out_ref,
                        ap_acc, an_acc, *, margin, n_valid, m_valid, tile_n):
    j = pl.program_id(0)

    @pl.when(j == 0)
    def _init():
        ap_acc[...] = jnp.full_like(ap_acc, -jnp.inf)
        an_acc[...] = jnp.full_like(an_acc, jnp.inf)

    # (n_pad, d) bf16 @ (d, TILE_N) bf16 -> (n_pad, TILE_N) f32 on the MXU.
    sim = jnp.dot(col_ref[...], bank_ref[...],
                  preferred_element_type=jnp.float32)

    # Fold the bank-row L2 normalization into the result: scale each output
    # column by 1 / max(||bank_col||, eps).  rsqrt lands on the EUP slot.
    r32 = bank_ref[...].astype(jnp.float32)
    ssq = jnp.sum(r32 * r32, axis=0, keepdims=True)               # (1, TILE_N)
    inv_norm = jax.lax.rsqrt(jnp.maximum(ssq, jnp.float32(_EPS * _EPS)))
    dist = 1.0 - sim * inv_norm                                   # (n_pad, TILE_N)

    # Positive mask from labels; columns beyond the true bank size (padding)
    # are excluded from both reductions via a column-index mask.
    pos = tcol_ref[...] == trow_ref[...]                          # (n_pad, TILE_N)
    col_idx = j * tile_n + jax.lax.broadcasted_iota(jnp.int32, (1, tile_n), 1)
    valid = col_idx < m_valid                                     # (1, TILE_N)

    neg_inf = jnp.float32(-jnp.inf)
    pos_inf = jnp.float32(jnp.inf)
    ap_tile = jnp.max(jnp.where(jnp.logical_and(pos, valid), dist, neg_inf),
                      axis=1, keepdims=True)                      # (n_pad, 1)
    an_tile = jnp.min(jnp.where(jnp.logical_and(valid, jnp.logical_not(pos)),
                                dist, pos_inf),
                      axis=1, keepdims=True)                      # (n_pad, 1)

    ap_acc[...] = jnp.maximum(ap_acc[...], ap_tile)
    an_acc[...] = jnp.minimum(an_acc[...], an_tile)

    @pl.when(j == pl.num_programs(0) - 1)
    def _finalize():
        # relu(dist_ap - dist_an + margin); rows with no positive/negative in
        # the bank give -inf -> relu -> 0 (same as the masked JAX reference).
        hinge = jnp.maximum(ap_acc[...] - an_acc[...] + jnp.float32(margin), 0.0)
        row_idx = jax.lax.broadcasted_iota(jnp.int32, hinge.shape, 0)
        hinge = jnp.where(row_idx < n_valid, hinge, 0.0)          # drop padded rows
        out_ref[0, 0] = jnp.sum(hinge) / jnp.float32(n_valid)


def triplet_loss_xbm(inputs_col, targets_col, inputs_row, targets_row,
                     margin=0.3, norm=False, tile_n=512):
    # norm=True in the PyTorch module just L2-normalizes before cosine_dist,
    # which re-normalizes anyway -> numerically identical; nothing extra to do.
    del norm
    n, d = inputs_col.shape
    m, d2 = inputs_row.shape
    assert d == d2

    # Hoisted: normalize the (small) query batch once in f32, cast to bf16.
    col32 = inputs_col.astype(jnp.float32)
    inv = jax.lax.rsqrt(
        jnp.maximum(jnp.sum(col32 * col32, axis=-1, keepdims=True),
                    jnp.float32(_EPS * _EPS)))
    col_n = (col32 * inv).astype(jnp.bfloat16)                    # (n, d)

    # Lane-dense bank layout: (d, m) bf16 so each grid step DMAs a (d, TILE_N)
    # tile whose last dim is a multiple of 128 (no in-kernel transpose).
    bank_t = inputs_row.astype(jnp.bfloat16).T                    # (d, m)

    # Tile over the bank axis; never larger than the (128-rounded) bank.
    tile_n = max(128, _round_up(min(tile_n, _round_up(m, 128)), 128))
    n_pad = _round_up(n, 8)
    m_pad = _round_up(m, tile_n)
    grid_m = m_pad // tile_n

    col_n = jnp.pad(col_n, ((0, n_pad - n), (0, 0)))
    bank_t = jnp.pad(bank_t, ((0, 0), (0, m_pad - m)))
    tcol = jnp.pad(targets_col.reshape(n, 1).astype(jnp.int32),
                   ((0, n_pad - n), (0, 0)), constant_values=-1)
    trow = jnp.pad(targets_row.reshape(1, m).astype(jnp.int32),
                   ((0, 0), (0, m_pad - m)), constant_values=-2)

    kernel = functools.partial(_triplet_xbm_kernel, margin=float(margin),
                               n_valid=n, m_valid=m, tile_n=tile_n)

    # TODO(synk): for v7x (2 TCs) an extra "parallel" n-tile grid axis with
    # per-block partial sums would use the second core; omitted to keep the
    # scalar-output reduction simple (neutral on v5e/v6e).
    out = pl.pallas_call(
        kernel,
        out_shape=jax.ShapeDtypeStruct((1, 1), jnp.float32),
        grid_spec=pltpu.PrefetchScalarGridSpec(
            num_scalar_prefetch=0,
            grid=(grid_m,),
            in_specs=[
                pl.BlockSpec((n_pad, d), lambda j: (0, 0)),    # queries, resident
                pl.BlockSpec((d, tile_n), lambda j: (0, j)),   # bank, streamed
                pl.BlockSpec((n_pad, 1), lambda j: (0, 0)),    # query labels
                pl.BlockSpec((1, tile_n), lambda j: (0, j)),   # bank labels
            ],
            out_specs=pl.BlockSpec(memory_space=pltpu.SMEM),   # scalar loss
            scratch_shapes=[pltpu.VMEM((n_pad, 1), jnp.float32),   # dist_ap acc
                            pltpu.VMEM((n_pad, 1), jnp.float32)],  # dist_an acc
        ),
        compiler_params=pltpu.CompilerParams(
            dimension_semantics=("arbitrary",),                # m axis is a reduction
            vmem_limit_bytes=32 * 1024 * 1024),                # safe on v5e/v6e/v7x
    )(col_n, bank_t, tcol, trow)
    return out[0, 0]


def _reference(inputs_col, targets_col, inputs_row, targets_row, margin=0.3):
    # Pure-JAX f32 reference for a sanity check.
    def l2n(x):
        return x / jnp.maximum(jnp.linalg.norm(x, axis=-1, keepdims=True), 1e-12)
    dist = 1.0 - l2n(inputs_col) @ l2n(inputs_row).T
    pos = targets_col[:, None] == targets_row[None, :]
    dist_ap = jnp.max(jnp.where(pos, dist, -jnp.inf), axis=1)
    dist_an = jnp.min(jnp.where(pos, jnp.inf, dist), axis=1)
    return jnp.mean(jnp.maximum(dist_ap - dist_an + margin, 0.0))


if __name__ == "__main__":
    key = jax.random.PRNGKey(0)
    # Small but exercises the tiled path: n=6 -> row padding to 8,
    # m=300 with tile_n=128 -> 3 grid steps + column padding in the last tile.
    n, m, d = 6, 300, 128
    k1, k2 = jax.random.split(key)

    inputs_col = jax.random.normal(k1, (n, d), dtype=jnp.float32)
    inputs_row = jax.random.normal(k2, (m, d), dtype=jnp.float32)
    # Deterministic labels; every query has >=1 positive and >=1 negative.
    targets_col = (jnp.arange(n) % 4).astype(jnp.int32)
    targets_row = (jnp.arange(m) % 5).astype(jnp.int32)

    loss = triplet_loss_xbm(inputs_col, targets_col, inputs_row, targets_row,
                            margin=0.3, norm=False, tile_n=128)
    loss = jax.block_until_ready(loss)

    ref = _reference(inputs_col, targets_col, inputs_row, targets_row, margin=0.3)
    assert jnp.isfinite(loss), loss
    # bf16 bank/query cast gives ~1e-2-level deviation vs the f32 reference.
    assert jnp.abs(loss - ref) < 3e-2, (loss, ref)

    print("KERNEL_OK")
</pallas_src>

<mosaic_0001>
module attributes {stable_mosaic.version = 11 : i64} {
  func.func @_triplet_xbm_kernel(%arg0: i32, %arg1: memref<8x128xbf16, #tpu.memory_space<vmem>>, %arg2: memref<128x128xbf16, #tpu.memory_space<vmem>>, %arg3: memref<8x1xi32, #tpu.memory_space<vmem>>, %arg4: memref<1x128xi32, #tpu.memory_space<vmem>>, %arg5: memref<1x1xf32, #tpu.memory_space<smem>>, %arg6: memref<8x1xf32, #tpu.memory_space<vmem>>, %arg7: memref<8x1xf32, #tpu.memory_space<vmem>>) attributes {dimension_semantics = [#tpu.dimension_semantics<arbitrary>], iteration_bounds = array<i64: 3>, scalar_prefetch = 0 : i64, scratch_operands = 2 : i64, tpu.core_type = #tpu.core_type<tc>, window_params = [{pipeline_mode = #tpu.pipeline_mode<synchronous>, transform_indices = @transform_0, window_bounds = array<i64: 8, 128>}, {transform_indices = @transform_1, window_bounds = array<i64: 128, 128>}, {pipeline_mode = #tpu.pipeline_mode<synchronous>, transform_indices = @transform_2, window_bounds = array<i64: 8, 1>}, {transform_indices = @transform_3, window_bounds = array<i64: 1, 128>}, {transform_indices = @transform_4, window_bounds = array<i64: 1, 1>}]} {
    %c0_i32 = arith.constant 0 : i32
    %0 = arith.cmpi eq, %arg0, %c0_i32 : i32
    %1 = arith.extui %0 : i1 to i32
    %c0_i32_0 = arith.constant 0 : i32
    %2 = arith.cmpi ne, %1, %c0_i32_0 : i32
    scf.if %2 {
      %cst_27 = arith.constant 0xFF800000 : f32
      %51 = vector.broadcast %cst_27 : f32 to vector<8x1xf32>
      %c0_28 = arith.constant 0 : index
      %c0_29 = arith.constant 0 : index
      %52 = vector.load %arg6[%c0_28, %c0_29] : memref<8x1xf32, #tpu.memory_space<vmem>>, vector<8x1xf32>
      tpu.vector_store %arg6[%c0_28, %c0_29], %51 {strides = array<i32>} : memref<8x1xf32, #tpu.memory_space<vmem>>, vector<8x1xf32>,
      %cst_30 = arith.constant 0x7F800000 : f32
      %53 = vector.broadcast %cst_30 : f32 to vector<8x1xf32>
      %c0_31 = arith.constant 0 : index
      %c0_32 = arith.constant 0 : index
      %54 = vector.load %arg7[%c0_31, %c0_32] : memref<8x1xf32, #tpu.memory_space<vmem>>, vector<8x1xf32>
      tpu.vector_store %arg7[%c0_31, %c0_32], %53 {strides = array<i32>} : memref<8x1xf32, #tpu.memory_space<vmem>>, vector<8x1xf32>,
    } else {
    }
    %c0 = arith.constant 0 : index
    %c0_1 = arith.constant 0 : index
    %3 = vector.load %arg1[%c0, %c0_1] : memref<8x128xbf16, #tpu.memory_space<vmem>>, vector<8x128xbf16>
    %c0_2 = arith.constant 0 : index
    %c0_3 = arith.constant 0 : index
    %4 = vector.load %arg2[%c0_2, %c0_3] : memref<128x128xbf16, #tpu.memory_space<vmem>>, vector<128x128xbf16>
    %cst = arith.constant dense<0.000000e+00> : vector<8x128xf32>
    %5 = tpu.matmul %3, %4, %cst {dimension_numbers = #tpu.dot_dimension_numbers<[1], [0], [0], [1], [0, 0, 1, 1], [], []>} : vector<8x128xbf16>, vector<128x128xbf16>, vector<8x128xf32> -> vector<8x128xf32>
    %c0_4 = arith.constant 0 : index
    %c0_5 = arith.constant 0 : index
    %6 = vector.load %arg2[%c0_4, %c0_5] : memref<128x128xbf16, #tpu.memory_space<vmem>>, vector<128x128xbf16>
    %7 = arith.extf %6 : vector<128x128xbf16> to vector<128x128xf32>
    %8 = arith.mulf %7, %7 : vector<128x128xf32>
    %cst_6 = arith.constant dense<0.000000e+00> : vector<128xf32>
    %9 = vector.multi_reduction <add>, %8, %cst_6 [0] : vector<128x128xf32> to vector<128xf32>
    %10 = vector.shape_cast %9 : vector<128xf32> to vector<1x128xf32>
    %cst_7 = arith.constant 1.000000e-24 : f32
    %11 = vector.broadcast %cst_7 : f32 to vector<1x128xf32>
    %12 = arith.maximumf %10, %11 : vector<1x128xf32>
    %13 = math.rsqrt %12 : vector<1x128xf32>
    %14 = vector.broadcast %13 : vector<1x128xf32> to vector<8x128xf32>
    %15 = arith.mulf %5, %14 : vector<8x128xf32>
    %cst_8 = arith.constant 1.000000e+00 : f32
    %16 = vector.broadcast %cst_8 : f32 to vector<8x128xf32>
    %17 = arith.subf %16, %15 : vector<8x128xf32>
    %c0_9 = arith.constant 0 : index
    %c0_10 = arith.constant 0 : index
    %18 = vector.load %arg3[%c0_9, %c0_10] : memref<8x1xi32, #tpu.memory_space<vmem>>, vector<8x1xi32>
    %c0_11 = arith.constant 0 : index
    %c0_12 = arith.constant 0 : index
    %19 = vector.load %arg4[%c0_11, %c0_12] : memref<1x128xi32, #tpu.memory_space<vmem>>, vector<1x128xi32>
    %20 = vector.broadcast %18 : vector<8x1xi32> to vector<8x128xi32>
    %21 = vector.broadcast %19 : vector<1x128xi32> to vector<8x128xi32>
    %22 = arith.cmpi eq, %20, %21 : vector<8x128xi32>
    %c128_i32 = arith.constant 128 : i32
    %23 = arith.muli %arg0, %c128_i32 : i32
    %24 = tpu.iota {dimensions = array<i32: 1>} : vector<1x128xi32>
    %25 = vector.broadcast %23 : i32 to vector<1x128xi32>
    %26 = arith.addi %25, %24 : vector<1x128xi32>
    %c300_i32 = arith.constant 300 : i32
    %27 = vector.broadcast %c300_i32 : i32 to vector<1x128xi32>
    %28 = arith.cmpi slt, %26, %27 : vector<1x128xi32>
    %29 = vector.broadcast %28 : vector<1x128xi1> to vector<8x128xi1>
    %30 = arith.andi %22, %29 : vector<8x128xi1>
    %cst_13 = arith.constant 0xFF800000 : f32
    %31 = vector.broadcast %cst_13 : f32 to vector<8x128xf32>
    %32 = arith.select %30, %17, %31 : vector<8x128xi1>, vector<8x128xf32>
    %cst_14 = arith.constant dense<0xFF800000> : vector<8xf32>
    %33 = vector.multi_reduction <maximumf>, %32, %cst_14 [1] : vector<8x128xf32> to vector<8xf32>
    %34 = vector.shape_cast %33 : vector<8xf32> to vector<8x1xf32>
    %cst_15 = arith.constant dense<true> : vector<8x128xi1>
    %35 = arith.xori %22, %cst_15 : vector<8x128xi1>
    %36 = vector.broadcast %28 : vector<1x128xi1> to vector<8x128xi1>
    %37 = arith.andi %36, %35 : vector<8x128xi1>
    %cst_16 = arith.constant 0x7F800000 : f32
    %38 = vector.broadcast %cst_16 : f32 to vector<8x128xf32>
    %39 = arith.select %37, %17, %38 : vector<8x128xi1>, vector<8x128xf32>
    %cst_17 = arith.constant dense<0x7F800000> : vector<8xf32>
    %40 = vector.multi_reduction <minimumf>, %39, %cst_17 [1] : vector<8x128xf32> to vector<8xf32>
    %41 = vector.shape_cast %40 : vector<8xf32> to vector<8x1xf32>
    %c0_18 = arith.constant 0 : index
    %c0_19 = arith.constant 0 : index
    %42 = vector.load %arg6[%c0_18, %c0_19] : memref<8x1xf32, #tpu.memory_space<vmem>>, vector<8x1xf32>
    %43 = arith.maximumf %42, %34 : vector<8x1xf32>
    %c0_20 = arith.constant 0 : index
    %c0_21 = arith.constant 0 : index
    %44 = vector.load %arg6[%c0_20, %c0_21] : memref<8x1xf32, #tpu.memory_space<vmem>>, vector<8x1xf32>
    tpu.vector_store %arg6[%c0_20, %c0_21], %43 {strides = array<i32>} : memref<8x1xf32, #tpu.memory_space<vmem>>, vector<8x1xf32>,
    %c0_22 = arith.constant 0 : index
    %c0_23 = arith.constant 0 : index
    %45 = vector.load %arg7[%c0_22, %c0_23] : memref<8x1xf32, #tpu.memory_space<vmem>>, vector<8x1xf32>
    %46 = arith.minimumf %45, %41 : vector<8x1xf32>
    %c0_24 = arith.constant 0 : index
    %c0_25 = arith.constant 0 : index
    %47 = vector.load %arg7[%c0_24, %c0_25] : memref<8x1xf32, #tpu.memory_space<vmem>>, vector<8x1xf32>
    tpu.vector_store %arg7[%c0_24, %c0_25], %46 {strides = array<i32>} : memref<8x1xf32, #tpu.memory_space<vmem>>, vector<8x1xf32>,
    %c2_i32 = arith.constant 2 : i32
    %48 = arith.cmpi eq, %arg0, %c2_i32 : i32
    %49 = arith.extui %48 : i1 to i32
    %c0_i32_26 = arith.constant 0 : i32
    %50 = arith.cmpi ne, %49, %c0_i32_26 : i32
    scf.if %50 {
      %c0_27 = arith.constant 0 : index
      %c0_28 = arith.constant 0 : index
      %51 = vector.load %arg6[%c0_27, %c0_28] : memref<8x1xf32, #tpu.memory_space<vmem>>, vector<8x1xf32>
      %c0_29 = arith.constant 0 : index
      %c0_30 = arith.constant 0 : index
      %52 = vector.load %arg7[%c0_29, %c0_30] : memref<8x1xf32, #tpu.memory_space<vmem>>, vector<8x1xf32>
      %53 = arith.subf %51, %52 : vector<8x1xf32>
      %cst_31 = arith.constant 3.000000e-01 : f32
      %54 = vector.broadcast %cst_31 : f32 to vector<8x1xf32>
      %55 = arith.addf %53, %54 : vector<8x1xf32>
      %cst_32 = arith.constant 0.000000e+00 : f32
      %56 = vector.broadcast %cst_32 : f32 to vector<8x1xf32>
      %57 = arith.maximumf %55, %56 : vector<8x1xf32>
      %58 = tpu.iota {dimensions = array<i32: 0>} : vector<8x1xi32>
      %c6_i32 = arith.constant 6 : i32
      %59 = vector.broadcast %c6_i32 : i32 to vector<8x1xi32>
      %60 = arith.cmpi slt, %58, %59 : vector<8x1xi32>
      %cst_33 = arith.constant 0.000000e+00 : f32
      %61 = vector.broadcast %cst_33 : f32 to vector<8x1xf32>
      %62 = arith.select %60, %57, %61 : vector<8x1xi1>, vector<8x1xf32>
      %63 = vector.shape_cast %62 : vector<8x1xf32> to vector<1x8x1xf32>
      %cst_34 = arith.constant dense<0.000000e+00> : vector<1xf32>
      %64 = vector.multi_reduction <add>, %63, %cst_34 [1, 2] : vector<1x8x1xf32> to vector<1xf32>
      %65 = vector.shape_cast %64 : vector<1xf32> to vector<1x1x1xf32>
      %66 = vector.extract %65[0, 0, 0] : f32 from vector<1x1x1xf32>
      %cst_35 = arith.constant 6.000000e+00 : f32
      %67 = arith.divf %66, %cst_35 : f32
      %c0_36 = arith.constant 0 : index
      %c0_37 = arith.constant 0 : index
      %68 = memref.load %arg5[%c0_36, %c0_37] : memref<1x1xf32, #tpu.memory_space<smem>>
      memref.store %67, %arg5[%c0_36, %c0_37] : memref<1x1xf32, #tpu.memory_space<smem>>
    } else {
    }
    return
  }
  func.func @transform_0(%arg0: i32) -> (i32, i32) {
    %c0_i32 = arith.constant 0 : i32
    %c0_i32_0 = arith.constant 0 : i32
    %c0_i32_1 = arith.constant 0 : i32
    return %c0_i32, %c0_i32_0 : i32, i32
  }
  func.func @transform_1(%arg0: i32) -> (i32, i32) {
    %c0_i32 = arith.constant 0 : i32
    %c0_i32_0 = arith.constant 0 : i32
    return %c0_i32, %arg0 : i32, i32
  }
  func.func @transform_2(%arg0: i32) -> (i32, i32) {
    %c0_i32 = arith.constant 0 : i32
    %c0_i32_0 = arith.constant 0 : i32
    %c0_i32_1 = arith.constant 0 : i32
    return %c0_i32, %c0_i32_0 : i32, i32
  }
  func.func @transform_3(%arg0: i32) -> (i32, i32) {
    %c0_i32 = arith.constant 0 : i32
    %c0_i32_0 = arith.constant 0 : i32
    return %c0_i32, %arg0 : i32, i32
  }
  func.func @transform_4(%arg0: i32) -> (i32, i32) {
    %c0_i32 = arith.constant 0 : i32
    %c0_i32_0 = arith.constant 0 : i32
    %c0_i32_1 = arith.constant 0 : i32
    return %c0_i32, %c0_i32_0 : i32, i32
  }
}

</mosaic_0001>

<llo_original>
// kernel: tpu_custom_call.1
$region0: #{tpu_custom_call.1}
  #allocation0 [shape = 'u32[]', space=smem, size = 0x4, offset = 0x4, fixed_abs, tag = 'smem constant byte address 0x4 - core index']
  #allocation1 [shape = 'u32[144,128]{1,0:T(1,128)}', space=vmem, size = 0x12000, scoped, tag = 'internal scratch']
  #allocation2 [shape = 'f32[8,1]{1,0:T(8,128)}', space=vmem, size = 0x1000, scoped, tag = 'scratch operand']
  #allocation3 [shape = 'f32[8,1]{1,0:T(8,128)}', space=vmem, size = 0x1000, scoped, tag = 'scratch operand']
  %s0 = inlined_call_operand.vmem [shape: bf16[8,128], index: 0, kind: input, shape index: {}]
  %s1 = inlined_call_operand.hbm [shape: bf16[128,384], index: 1, kind: input, shape index: {}]
  %s2 = inlined_call_operand.vmem [shape: s32[8,1], index: 2, kind: input, shape index: {}]
  %s3 = inlined_call_operand.vmem [shape: s32[1,384], index: 3, kind: input, shape index: {}]
  %s4 = inlined_call_operand.hbm [shape: f32[1,1], index: 4, kind: output, shape index: {}]
  %s5 = sld [smem:[#allocation0]]
  $region61: #{tpu_custom_call.1} parent=0
    _
  %s7 = ssub.s32 1, %s5
  %s8 = scalar_select 0, %s7, %s5
  $region1: #{tpu_custom_call.1} parent=0
    #allocation4 [shape = 'u8[65536]{0}', space=vmem, size = 0x10000, scoped, tag = 'input window, operand 1']
    #allocation5 [shape = 's32[2]{0}', space=sflag, size = 0x8, scoped, tag = 'scoped memory for tpu_custom_call.1']
    #allocation6 [shape = 's32[2]{0}', space=sflag, size = 0x8, scoped, tag = 'scoped memory for tpu_custom_call.1']
    #allocation7 [shape = 'u8[512]{0}', space=smem, size = 0x200, scoped, tag = 'output window, operand 0, single buffered']
    %9 = vsyncpa [#allocation5], 0
    %s10 = scalar_lea.sflag [#allocation5], 1
    %11 = vsyncpa %s10, 0
    %12 = vsyncpa [#allocation6], 0
    loop: start=0, step=1, limit=5
    $region2: #{tpu_custom_call.1} parent=1 // loop_pre_header
      _
    $region3: #{tpu_custom_call.1} parent=1 // loop_header
      %s14 = sphi 0, %s18
      %p15 = scmp.ge.s32.totalorder %s14, 5
      %s22 = sphi 0, %s22
      %s24 = sphi 0, %s22
      %s25 = sphi 0, %s24
      %s39 = sphi 0, %s25
      %s45 = sphi 0, %s47
      %s48 = sphi 0, %s45
      %s49 = sphi 0, %s48
      %s65 = sphi 0, %s49
      %s69 = sphi 0, %s69
      %s71 = sphi 0, %s69
      %s72 = sphi 0, %s71
      %s86 = sphi 0, %s72
      %s92 = sphi 0, %s94
      %s95 = sphi 0, %s92
      %s96 = sphi 0, %s95
      %s112 = sphi 0, %s96
      %s116 = sphi 0, %s116
      %s118 = sphi 0, %s116
      %s119 = sphi 0, %s118
      %s133 = sphi 0, %s119
    $region4: #{tpu_custom_call.1} parent=1 // loop_header_branch
      %17 = sbr.rel (%p15) target = $region8
    $region5: #{tpu_custom_call.1} parent=1 // loop_body
      %s19 = ssub.s32 %s14, 1
      %s20 = ssub.s32 %s14, 2
      %s21 = sadd.s32 %s14, 1
      %s23 = sadd.s32 %s22, 1
      %p26 = scmp.eq.s32.totalorder %s14, 2
      %p27 = scmp.ne.s32.totalorder %s22, %s24
      %p28 = scmp.eq.s32.totalorder %s14, 0
      %p29 = por %p27, %p28
      %p30 = scmp.ne.s32.totalorder %s22, %s24
      %p31 = scmp.eq.s32.totalorder %s19, 2
      %p32 = por %p30, %p31
      %p33 = scmp.ne.s32.totalorder %s24, %s25
      %p34 = scmp.eq.s32.totalorder %s19, 0
      %p35 = por %p33, %p34
      %p36 = scmp.ne.s32.totalorder %s24, %s25
      %p37 = scmp.eq.s32.totalorder %s20, 2
      %p38 = por %p36, %p37
      %p40 = scmp.ne.s32.totalorder %s25, %s39
      %p41 = scmp.eq.s32.totalorder %s20, 0
      %p42 = por %p40, %p41
      %s43 = ssub.s32 %s14, %s21
      %p44 = scmp.eq.s32.totalorder %s43, 0
      %s46 = sadd.s32 %s45, 1
      %s47 = scalar_select %p44, %s45, %s46
      %p50 = pneg %p44
      %p51 = scmp.eq.s32.totalorder %s14, 2
      %p52 = por %p50, %p51
      %p53 = scmp.ne.s32.totalorder %s45, %s48
      %p54 = scmp.eq.s32.totalorder %s14, 0
      %p55 = por %p53, %p54
      %p56 = scmp.ne.s32.totalorder %s45, %s48
      %p57 = scmp.eq.s32.totalorder %s19, 2
      %p58 = por %p56, %p57
      %p59 = scmp.ne.s32.totalorder %s48, %s49
      %p60 = scmp.eq.s32.totalorder %s19, 0
      %p61 = por %p59, %p60
      %p62 = scmp.ne.s32.totalorder %s48, %s49
      %p63 = scmp.eq.s32.totalorder %s20, 2
      %p64 = por %p62, %p63
      %p66 = scmp.ne.s32.totalorder %s49, %s65
      %p67 = scmp.eq.s32.totalorder %s20, 0
      %p68 = por %p66, %p67
      %s70 = sadd.s32 %s69, 1
      %p73 = scmp.eq.s32.totalorder %s14, 2
      %p74 = scmp.ne.s32.totalorder %s69, %s71
      %p75 = scmp.eq.s32.totalorder %s14, 0
      %p76 = por %p74, %p75
      %p77 = scmp.ne.s32.totalorder %s69, %s71
      %p78 = scmp.eq.s32.totalorder %s19, 2
      %p79 = por %p77, %p78
      %p80 = scmp.ne.s32.totalorder %s71, %s72
      %p81 = scmp.eq.s32.totalorder %s19, 0
      %p82 = por %p80, %p81
      %p83 = scmp.ne.s32.totalorder %s71, %s72
      %p84 = scmp.eq.s32.totalorder %s20, 2
      %p85 = por %p83, %p84
      %p87 = scmp.ne.s32.totalorder %s72, %s86
      %p88 = scmp.eq.s32.totalorder %s20, 0
      %p89 = por %p87, %p88
      %s90 = ssub.s32 %s14, %s21
      %p91 = scmp.eq.s32.totalorder %s90, 0
      %s93 = sadd.s32 %s92, 1
      %s94 = scalar_select %p91, %s92, %s93
      %p97 = pneg %p91
      %p98 = scmp.eq.s32.totalorder %s14, 2
      %p99 = por %p97, %p98
      %p100 = scmp.ne.s32.totalorder %s92, %s95
      %p101 = scmp.eq.s32.totalorder %s14, 0
      %p102 = por %p100, %p101
      %p103 = scmp.ne.s32.totalorder %s92, %s95
      %p104 = scmp.eq.s32.totalorder %s19, 2
      %p105 = por %p103, %p104
      %p106 = scmp.ne.s32.totalorder %s95, %s96
      %p107 = scmp.eq.s32.totalorder %s19, 0
      %p108 = por %p106, %p107
      %p109 = scmp.ne.s32.totalorder %s95, %s96
      %p110 = scmp.eq.s32.totalorder %s20, 2
      %p111 = por %p109, %p110
      %p113 = scmp.ne.s32.totalorder %s96, %s112
      %p114 = scmp.eq.s32.totalorder %s20, 0
      %p115 = por %p113, %p114
      %s117 = sadd.s32 %s116, 1
      %p120 = scmp.eq.s32.totalorder %s14, 2
      %p121 = scmp.ne.s32.totalorder %s116, %s118
      %p122 = scmp.eq.s32.totalorder %s14, 0
      %p123 = por %p121, %p122
      %p124 = scmp.ne.s32.totalorder %s116, %s118
      %p125 = scmp.eq.s32.totalorder %s19, 2
      %p126 = por %p124, %p125
      %p127 = scmp.ne.s32.totalorder %s118, %s119
      %p128 = scmp.eq.s32.totalorder %s19, 0
      %p129 = por %p127, %p128
      %p130 = scmp.ne.s32.totalorder %s118, %s119
      %p131 = scmp.eq.s32.totalorder %s20, 2
      %p132 = por %p130, %p131
      %p134 = scmp.ne.s32.totalorder %s119, %s133
      %p135 = scmp.eq.s32.totalorder %s20, 0
      %p136 = por %p134, %p135
      %p137 = scmp.le.s32.totalorder 1, %s14
      %p138 = scmp.lt.s32.totalorder %s14, 4
      %p139 = pnand %p137, %p138
      %p140 = pneg %p139
      // Predicated region
      $region9: #{tpu_custom_call.1} parent=5 // pred_check
        _
      $region10: #{tpu_custom_call.1} parent=5 // pred_check_branch
        %142 = sbr.rel (%p139) target = $region12
      $region11: #{tpu_custom_call.1} parent=5 // pred_region
        %s143 = ssub.s32 %s14, 1
        // Predicated region
        $region13: #{tpu_custom_call.1} parent=11 // pred_check
          %p144 = pneg %p35
        $region14: #{tpu_custom_call.1} parent=11 // pred_check_branch
          %146 = sbr.rel (%p144) target = $region16
        $region15: #{tpu_custom_call.1} parent=11 // pred_region
          _
        $region16: #{tpu_custom_call.1} parent=11 // pred_fallthru
          _
        // Predicated region
        $region17: #{tpu_custom_call.1} parent=11 // pred_check
          %p147 = pneg %p82
        $region18: #{tpu_custom_call.1} parent=11 // pred_check_branch
          %149 = sbr.rel (%p147) target = $region20
        $region19: #{tpu_custom_call.1} parent=11 // pred_region
          _
        $region20: #{tpu_custom_call.1} parent=11 // pred_fallthru
          _
      $region12: #{tpu_custom_call.1} parent=5 // pred_fallthru
        _
      %p150 = scmp.lt.s32.totalorder %s14, 3
      // Predicated region
      $region21: #{tpu_custom_call.1} parent=5 // pred_check
        %p151 = pneg %p150
      $region22: #{tpu_custom_call.1} parent=5 // pred_check_branch
        %153 = sbr.rel (%p151) target = $region24
      $region23: #{tpu_custom_call.1} parent=5 // pred_region
        // Predicated region
        $region25: #{tpu_custom_call.1} parent=23 // pred_check
          %p154 = pneg %p55
        $region26: #{tpu_custom_call.1} parent=23 // pred_check_branch
          %156 = sbr.rel (%p154) target = $region28
        $region27: #{tpu_custom_call.1} parent=23 // pred_region
          %s157 = sand.u32 %s45, 1
          %s158 = scalar_lea.sflag [#allocation5], %s157
          %s159 = sand.u32 %s45, 1
          %s160 = smul.addr %s159, 64
          %s161 = scalar_lea.vmem [#allocation4], %s160
          %s163 = ssub.s32 1024, 1024
          %164 = vsyncadd %s158, %s163
          %s165 = smul.addr %s14, 64
          %s166 = scalar_lea.hbm %s1, %s165
          %s167 = sshll.u32 %s161, 4
          %s168 = int_to_ptr.vmem [resolvable:$true] %s167
          %173 = dma.hbm_to_vmem [thread:$0]  %s166, 1024, %s168, %s158, 192, 64, 4
        $region28: #{tpu_custom_call.1} parent=23 // pred_fallthru
          _
        // Predicated region
        $region29: #{tpu_custom_call.1} parent=23 // pred_check
          %p174 = pneg %p102
        $region30: #{tpu_custom_call.1} parent=23 // pred_check_branch
          %176 = sbr.rel (%p174) target = $region32
        $region31: #{tpu_custom_call.1} parent=23 // pred_region
          %p177 = scmp.lt.s32.totalorder %s14, 2
          %s178 = scalar_select %p177, %s14, 2
          %s179 = scalar_lea.vmem %s3, %s178
        $region32: #{tpu_custom_call.1} parent=23 // pred_fallthru
          _
      $region24: #{tpu_custom_call.1} parent=5 // pred_fallthru
        _
      %p180 = scmp.le.s32.totalorder 1, %s14
      %p181 = scmp.lt.s32.totalorder %s14, 4
      %p182 = pnand %p180, %p181
      %p183 = pneg %p182
      // Predicated region
      $region33: #{tpu_custom_call.1} parent=5 // pred_check
        _
      $region34: #{tpu_custom_call.1} parent=5 // pred_check_branch
        %185 = sbr.rel (%p182) target = $region36
      $region35: #{tpu_custom_call.1} parent=5 // pred_region
        %s186 = ssub.s32 %s14, 1
        %s187 = sand.u32 %s48, 1
        %s188 = scalar_lea.sflag [#allocation5], %s187
        %s189 = sand.u32 %s48, 1
        %s190 = smul.addr %s189, 64
        %s191 = scalar_lea.vmem [#allocation4], %s190
        // Predicated region
        $region37: #{tpu_custom_call.1} parent=35 // pred_check
          %p192 = pneg %p61
        $region38: #{tpu_custom_call.1} parent=35 // pred_check_branch
          %194 = sbr.rel (%p192) target = $region40
        $region39: #{tpu_custom_call.1} parent=35 // pred_region
          %195 = dma.done %s188, 1024
        $region40: #{tpu_custom_call.1} parent=35 // pred_fallthru
          _
        %p196 = pneg %p35
        %p197 = pneg %p32
        %s198 = sand.u32 %s48, 1
        %s199 = scalar_lea.sflag [#allocation5], %s198
        %s200 = sand.u32 %s48, 1
        %s201 = smul.addr %s200, 64
        %s202 = scalar_lea.vmem [#allocation4], %s201
        %p203 = pneg %p61
        %p204 = pneg %p58
        %p205 = pneg %p82
        %p206 = pneg %p79
        %p207 = scmp.lt.s32.totalorder %s19, 2
        %s208 = scalar_select %p207, %s19, 2
        %s209 = scalar_lea.vmem %s3, %s208
        %p210 = pneg %p108
        %p211 = pneg %p105
        %p212 = pneg %p129
        %p213 = pneg %p126
        %p214 = scmp.lt.s32.totalorder %s19, 2
        %s215 = scalar_select %p214, %s19, 2
        %s216 = scalar_lea.vmem %s3, %s215
        %p218 = scmp.eq.s32.totalorder %s19, 0
        // Predicated region
        $region41: #{tpu_custom_call.1} parent=35 // pred_check
          %p219 = pneg %p218
        $region42: #{tpu_custom_call.1} parent=35 // pred_check_branch
          %221 = sbr.rel (%p219) target = $region44
        $region43: #{tpu_custom_call.1} parent=35 // pred_region
          %vm222 = vcmask 7168
          %223 = vst.msk [vmem:[#allocation2] sm:$0xff] %vm222, -inf
          %224 = vst.msk [vmem:[#allocation3] sm:$0xff] %vm222, inf
        $region44: #{tpu_custom_call.1} parent=35 // pred_fallthru
          _
        %v225 = vld [vmem:[%s0] sm:$0xf]
        %v226 = vld [vmem:[%s191] sm:$0xf]
        %v227 = vld [vmem:[%s191 + $0x4] sm:$0xf]
        %v228 = vld [vmem:[%s191 + $0x8] sm:$0xf]
        %v229 = vld [vmem:[%s191 + $0xc] sm:$0xf]
        %v230 = vld [vmem:[%s191 + $0x10] sm:$0xf]
        %v231 = vld [vmem:[%s191 + $0x14] sm:$0xf]
        %v232 = vld [vmem:[%s191 + $0x18] sm:$0xf]
        %v233 = vld [vmem:[%s191 + $0x1c] sm:$0xf]
        %v234 = vld [vmem:[%s191 + $0x20] sm:$0xf]
        %v235 = vld [vmem:[%s191 + $0x24] sm:$0xf]
        %v236 = vld [vmem:[%s191 + $0x28] sm:$0xf]
        %v237 = vld [vmem:[%s191 + $0x2c] sm:$0xf]
        %v238 = vld [vmem:[%s191 + $0x30] sm:$0xf]
        %v239 = vld [vmem:[%s191 + $0x34] sm:$0xf]
        %v240 = vld [vmem:[%s191 + $0x38] sm:$0xf]
        %v241 = vld [vmem:[%s191 + $0x3c] sm:$0xf]
        %v258 = vunpack.c.l.b16 %v226
        %v259 = vunpack.c.l.b16 %v227
        %v260 = vunpack.c.l.b16 %v228
        %v261 = vunpack.c.l.b16 %v229
        %v262 = vunpack.c.l.b16 %v230
        %v263 = vunpack.c.l.b16 %v231
        %v264 = vunpack.c.l.b16 %v232
        %v265 = vunpack.c.l.b16 %v233
        %v266 = vunpack.c.l.b16 %v234
        %v267 = vunpack.c.l.b16 %v235
        %v268 = vunpack.c.l.b16 %v236
        %v269 = vunpack.c.l.b16 %v237
        %v270 = vunpack.c.l.b16 %v238
        %v271 = vunpack.c.l.b16 %v239
        %v272 = vunpack.c.l.b16 %v240
        %v273 = vunpack.c.l.b16 %v241
        %v274 = vpack.c.b16 %v259, %v258
        %v275 = vpack.c.b16 %v261, %v260
        %v276 = vpack.c.b16 %v263, %v262
        %v277 = vpack.c.b16 %v265, %v264
        %v278 = vpack.c.b16 %v267, %v266
        %v279 = vpack.c.b16 %v269, %v268
        %v280 = vpack.c.b16 %v271, %v270
        %v281 = vpack.c.b16 %v273, %v272
        %290 = vmatprep.subr.bf16.mxu0 0
        %291 = vmatpush1.bf16.msra.mxu0 %v281
        %292 = vmatprep.subr.bf16.mxu0 0
        %293 = vmatpush1.bf16.msra.mxu0 %v280
        %294 = vmatprep.subr.bf16.mxu0 0
        %295 = vmatpush1.bf16.msra.mxu0 %v279
        %296 = vmatprep.subr.bf16.mxu0 0
        %297 = vmatpush1.bf16.msra.mxu0 %v278
        %298 = vmatprep.subr.bf16.mxu0 0
        %299 = vmatpush1.bf16.msra.mxu0 %v277
        %300 = vmatprep.subr.bf16.mxu0 0
        %301 = vmatpush1.bf16.msra.mxu0 %v276
        %302 = vmatprep.subr.bf16.mxu0 0
        %303 = vmatpush1.bf16.msra.mxu0 %v275
        %304 = vmatprep.subr.bf16.mxu0 0
        %305 = vmatpush1.bf16.msra.mxu0 %v274
        %306 = vmatprep.subr.bf16.mxu0 0
        %307 = vmatpush2.bf16.msra.mxu0 0
        %308 = vmatprep.subr.bf16.mxu0 0
        %309 = vmatpush2.bf16.msra.mxu0 0
        %310 = vmatprep.subr.bf16.mxu0 0
        %311 = vmatpush2.bf16.msra.mxu0 0
        %312 = vmatprep.subr.bf16.mxu0 0
        %313 = vmatpush2.bf16.msra.mxu0 0
        %314 = vmatprep.subr.bf16.mxu0 0
        %315 = vmatpush2.bf16.msra.mxu0 0
        %316 = vmatprep.subr.bf16.mxu0 0
        %317 = vmatpush2.bf16.msra.mxu0 0
        %318 = vmatprep.subr.bf16.mxu0 0
        %319 = vmatpush2.bf16.msra.mxu0 0
        %320 = vmatprep.subr.bf16.mxu0 0
        %321 = vmatpush2.bf16.msra.mxu0 0
        %322 = vmatprep.mubr.bf16.mxu0 0
        %323 = vmatmul.mubr.bf16.gmra.mxu0 %v225
        %v324 = vpop.f32.mrf.mxu0
        %v325 = vadd.f32 0.0, %v324
        %v326 = vpop.f32.mrf.mxu0
        %v327 = vpop.f32.mrf.mxu0
        %v328 = vpop.f32.mrf.mxu0
        %329 = vdwg.mxu0
        %v330 = vunpack.c.l.bf16 %v226
        %v331 = vunpack.c.l.bf16 %v227
        %v332 = vunpack.c.l.bf16 %v228
        %v333 = vunpack.c.l.bf16 %v229
        %v334 = vunpack.c.l.bf16 %v230
        %v335 = vunpack.c.l.bf16 %v231
        %v336 = vunpack.c.l.bf16 %v232
        %v337 = vunpack.c.l.bf16 %v233
        %v338 = vunpack.c.l.bf16 %v234
        %v339 = vunpack.c.l.bf16 %v235
        %v340 = vunpack.c.l.bf16 %v236
        %v341 = vunpack.c.l.bf16 %v237
        %v342 = vunpack.c.l.bf16 %v238
        %v343 = vunpack.c.l.bf16 %v239
        %v344 = vunpack.c.l.bf16 %v240
        %v345 = vunpack.c.l.bf16 %v241
        %v346 = vmul.f32 %v330, %v330
        %v347 = vmul.f32 %v331, %v331
        %v348 = vmul.f32 %v332, %v332
        %v349 = vmul.f32 %v333, %v333
        %v350 = vmul.f32 %v334, %v334
        %v351 = vmul.f32 %v335, %v335
        %v352 = vmul.f32 %v336, %v336
        %v353 = vmul.f32 %v337, %v337
        %v354 = vmul.f32 %v338, %v338
        %v355 = vmul.f32 %v339, %v339
        %v356 = vmul.f32 %v340, %v340
        %v357 = vmul.f32 %v341, %v341
        %v358 = vmul.f32 %v342, %v342
        %v359 = vmul.f32 %v343, %v343
        %v360 = vmul.f32 %v344, %v344
        %v361 = vmul.f32 %v345, %v345
        %v362 = vadd.f32 %v346, %v347
        %v363 = vadd.f32 %v362, %v348
        %v364 = vadd.f32 %v363, %v349
        %v365 = vadd.f32 %v364, %v350
        %v366 = vadd.f32 %v365, %v351
        %v367 = vadd.f32 %v366, %v352
        %v368 = vadd.f32 %v367, %v353
        %v369 = vadd.f32 %v368, %v354
        %v370 = vadd.f32 %v369, %v355
        %v371 = vadd.f32 %v370, %v356
        %v372 = vadd.f32 %v371, %v357
        %v373 = vadd.f32 %v372, %v358
        %v374 = vadd.f32 %v373, %v359
        %v375 = vadd.f32 %v374, %v360
        %v376 = vadd.f32 %v375, %v361
        %v377 = vrot.slane %v376, 4
        %v378 = vadd.f32 %v376, %v377
        %v379 = vrot.slane %v378, 2
        %v380 = vadd.f32 %v378, %v379
        %v381 = vrot.slane %v380, 1
        %v382 = vadd.f32 %v380, %v381
        %v383 = vmax.f32 %v382, 1e-24
        %v384 = vrsqrt.pop %v383
        %v385 = vmul.f32 %v325, %v384
        %v386 = vsub.f32 1.0, %v385
        %v387 = vld [vmem:[%s2] sm:$0xff]
        %v388 = vld [vmem:[%s216] sm:$0x1]
        %389 = vset.pattern.permute.xlu0 0
        %390 = vperm.xlu0 %389, %v387
        %v391 = vpop.permute.xlu0 %390
        %v392 = vlaneseq
        %v393 = vshrl.u32 %v392, 7
        %v394 = vsub.s32 0, %v393
        %v395 = vrot.slane %v388, %v394
        %vm396 = vcmp.eq.s32.totalorder %v391, %v395
        %s397 = smul.u32 %s19, 128
        %v398 = vlaneseq
        %v399 = vand.u32 %v398, 127
        %v400 = vstv %s397
        %v401 = vadd.s32 %v400, %v399
        %vm402 = vcmp.lt.s32.totalorder %v401, 300
        %v403 = vsel %vm402, 1, 0
        %vm404 = vcmp.eq.s32.totalorder %v403, 1
        %vm405 = vmand %vm396, %vm404
        %v406 = vsel %vm405, %v386, -inf
        %407 = vmax.xlane.f32.xlu0 %v406
        %v408 = vpop.xlane.xlu0 %407
        %vm409 = vmxor %vm396, 1
        %vm410 = vmand %vm404, %vm409
        %v411 = vsel %vm410, %v386, inf
        %412 = vmin.xlane.f32.xlu0 %v411
        %v413 = vpop.xlane.xlu0 %412
        %v414 = vld [vmem:[#allocation2] sm:$0xff]
        %v415 = vmax.f32 %v414, %v408
        %vm416 = vcmask 7168
        %417 = vst.msk [vmem:[#allocation2] sm:$0xff] %vm416, %v415
        %v418 = vld [vmem:[#allocation3] sm:$0xff]
        %v419 = vmin.f32 %v418, %v413
        %420 = vst.msk [vmem:[#allocation3] sm:$0xff] %vm416, %v419
        %p421 = scmp.eq.s32.totalorder %s19, 2
        // Predicated region
        $region45: #{tpu_custom_call.1} parent=35 // pred_check
          %p422 = pneg %p421
        $region46: #{tpu_custom_call.1} parent=35 // pred_check_branch
          %424 = sbr.rel (%p422) target = $region48
        $region47: #{tpu_custom_call.1} parent=35 // pred_region
          %v425 = vld [vmem:[#allocation2] sm:$0xff]
          %v426 = vld [vmem:[#allocation3] sm:$0xff]
          %v427 = vsub.f32 %v425, %v426
          %v428 = vadd.f32 %v427, 0.3
          %v429 = vmax.f32 %v428, 0.0
          %v430 = vlaneseq
          %v431 = vshrl.u32 %v430, 7
          %vm432 = vcmp.lt.s32.totalorder %v431, 6
          %v433 = vsel %vm432, %v429, 0.0
          %v434 = vsel %vm416, %v433, 0.0
          %435 = vadd.xlane.f32.xlu0 %v434
          %v436 = vpop.xlane.xlu0 %435
          %v437 = vrot.slane %v436, 4
          %v438 = vadd.f32 %v436, %v437
          %v439 = vrot.slane %v438, 2
          %v440 = vadd.f32 %v438, %v439
          %v441 = vrot.slane %v440, 1
          %v442 = vadd.f32 %v440, %v441
          %s443 = vtos %v442
          %v444 = vrcp.pop 6.0
          %s445 = vtos %v444
          %s446 = smul.f32 %s443, %s445
          %s447 = scalar_lea.smem [#allocation7], 0
          %448 = sst [smem:[%s447]] %s446
        $region48: #{tpu_custom_call.1} parent=35 // pred_fallthru
          _
        // Predicated region
        $region49: #{tpu_custom_call.1} parent=35 // pred_check
          %p449 = pneg %p126
        $region50: #{tpu_custom_call.1} parent=35 // pred_check_branch
          %451 = sbr.rel (%p449) target = $region52
        $region51: #{tpu_custom_call.1} parent=35 // pred_region
          %s453 = ssub.s32 16, 16
          %454 = vsyncadd [#allocation6], %s453
          %457 = dma.smem_to_hbm [#allocation7], 16, %s4, [#allocation6]
        $region52: #{tpu_custom_call.1} parent=35 // pred_fallthru
          _
        // Predicated region
        $region53: #{tpu_custom_call.1} parent=35 // pred_check
          %p458 = pneg %p126
        $region54: #{tpu_custom_call.1} parent=35 // pred_check_branch
          %460 = sbr.rel (%p458) target = $region56
        $region55: #{tpu_custom_call.1} parent=35 // pred_region
          %461 = dma.done [#allocation6], 16
        $region56: #{tpu_custom_call.1} parent=35 // pred_fallthru
          _
        %462 = sfence
      $region36: #{tpu_custom_call.1} parent=5 // pred_fallthru
        _
      %p463 = scmp.le.s32.totalorder 2, %s14
      // Predicated region
      $region57: #{tpu_custom_call.1} parent=5 // pred_check
        %p464 = pneg %p463
      $region58: #{tpu_custom_call.1} parent=5 // pred_check_branch
        %466 = sbr.rel (%p464) target = $region60
      $region59: #{tpu_custom_call.1} parent=5 // pred_region
        %s467 = ssub.s32 %s14, 2
      $region60: #{tpu_custom_call.1} parent=5 // pred_fallthru
        _
    $region6: #{tpu_custom_call.1} parent=1 // loop_footer
      %s18 = sadd.s32 1, %s14
    $region7: #{tpu_custom_call.1} parent=1 // loop_footer_branch
      %13 = sbr.rel target = $region3
    $region8: #{tpu_custom_call.1} parent=1 // loop_exit
      _
    %468 = vsyncpa [#allocation5], 1
    %s469 = scalar_lea.sflag [#allocation5], 1
    %470 = vsyncpa %s469, 1
    %471 = vsyncpa [#allocation6], 1
    %s472 = scalar_lea.sflag [#allocation6], 1
    %473 = vsyncpa %s472, 1

</llo_original>
